<compile_context>
chip_gen: v6e
topology: v6e:2x2x1
jax: 0.10.0
libtpu: 0.0.40
codegen_flags: <defaults>
</compile_context>

<pallas_src>
import jax
import jax.numpy as jnp
from jax.experimental import pallas as pl
from jax.experimental.pallas import tpu as pltpu


BN_EPS = 1e-5


def _mlp_classifier_kernel(x_ref, w_ref, gamma_ref, beta_ref,
                           w_cls_ref, b_cls_ref, out_ref, h_ref):
    """One grid step == one hidden layer (plus classifier epilogue on the last).

    x_ref:      (B, F)  f32   input (same block every step, DMA'd once)
    w_ref:      (F, F)  bf16  layer l's linear weight (streamed per step)
    gamma_ref:  (1, F)  f32   BN weight for layer l
    beta_ref:   (1, F)  f32   BN bias for layer l
    w_cls_ref:  (F, C)  bf16  classifier weight (resident)
    b_cls_ref:  (1, C)  f32   classifier bias (resident)
    out_ref:    (B, C)        logits (written on the last step only)
    h_ref:      (B, F)  f32   persistent activation scratch
    """
    l = pl.program_id(0)
    depth = pl.num_programs(0)

    # First grid step: load the input activations into the persistent scratch.
    @pl.when(l == 0)
    def _():
        h_ref[...] = x_ref[...].astype(jnp.float32)

    # Hidden layer l: Linear (bias omitted, cancelled by train-mode BN)
    #                 -> BatchNorm1d (batch stats) -> ReLU.
    h = h_ref[...]
    z = jnp.dot(h.astype(jnp.bfloat16), w_ref[...],
                preferred_element_type=jnp.float32)              # (B, F) f32

    # Batch statistics in a single pass (biased variance, as PyTorch BN uses
    # for normalization in training mode).
    mean = jnp.mean(z, axis=0, keepdims=True)                    # (1, F)
    var = jnp.mean(z * z, axis=0, keepdims=True) - mean * mean
    var = jnp.maximum(var, 0.0)                                  # guard rounding

    # Fold normalize + affine into one scale/shift, then ReLU.
    scale = gamma_ref[...] * jax.lax.rsqrt(var + BN_EPS)         # (1, F)
    shift = beta_ref[...] - mean * scale
    h_ref[...] = jnp.maximum(z * scale + shift, 0.0)

    # Last grid step: classifier_x2 epilogue on the final activations.
    @pl.when(l == depth - 1)
    def _():
        logits = jnp.dot(h_ref[...].astype(jnp.bfloat16), w_cls_ref[...],
                         preferred_element_type=jnp.float32) + b_cls_ref[...]
        out_ref[...] = logits.astype(out_ref.dtype)


def mlp_classifier_forward(x, layer_params, w_cls, b_cls):
    """x: (B, F) float32.
    layer_params: list of (w (F,F), b (1,F), gamma (1,F), beta (1,F)).
      The linear bias b is accepted (PyTorch shape parity) but NOT used: it is
      exactly cancelled by train-mode BatchNorm's mean subtraction.
    w_cls: (F, C), b_cls: (1, C).
    Returns logits (B, C).
    """
    depth = len(layer_params)
    B, F = x.shape
    C = w_cls.shape[1]

    # Stack per-layer params so a grid axis can stream them layer-by-layer,
    # and cast matmul weights to bf16 (MXU-native, halves HBM traffic).
    w_stack = jnp.stack([w.astype(jnp.bfloat16)
                         for (w, _b, _g, _be) in layer_params])      # (depth, F, F)
    gamma_stack = jnp.stack([g for (_w, _b, g, _be) in layer_params])   # (depth, 1, F)
    beta_stack = jnp.stack([be for (_w, _b, _g, be) in layer_params])   # (depth, 1, F)
    w_cls_bf16 = w_cls.astype(jnp.bfloat16)

    return pl.pallas_call(
        _mlp_classifier_kernel,
        out_shape=jax.ShapeDtypeStruct((B, C), x.dtype),
        grid_spec=pltpu.PrefetchScalarGridSpec(
            num_scalar_prefetch=0,
            grid=(depth,),
            in_specs=[
                pl.BlockSpec((B, F), lambda l: (0, 0)),           # x (resident)
                pl.BlockSpec((None, F, F), lambda l: (l, 0, 0)),  # layer weight (streamed)
                pl.BlockSpec((None, 1, F), lambda l: (l, 0, 0)),  # BN gamma
                pl.BlockSpec((None, 1, F), lambda l: (l, 0, 0)),  # BN beta
                pl.BlockSpec((F, C), lambda l: (0, 0)),           # classifier weight
                pl.BlockSpec((1, C), lambda l: (0, 0)),           # classifier bias
            ],
            out_specs=pl.BlockSpec((B, C), lambda l: (0, 0)),
            scratch_shapes=[pltpu.VMEM((B, F), jnp.float32)],      # persistent h
        ),
        compiler_params=pltpu.CompilerParams(
            dimension_semantics=("arbitrary",),                    # sequential layers
            vmem_limit_bytes=48 * 1024 * 1024,
        ),
    )(x, w_stack, gamma_stack, beta_stack, w_cls_bf16, b_cls)


def _reference_forward(x, layer_params, w_cls, b_cls):
    """Pure-JAX reference with identical numerics (bf16 weights, f32 accum)."""
    h = x.astype(jnp.float32)
    for (w, _b, g, be) in layer_params:
        z = jnp.dot(h.astype(jnp.bfloat16), w.astype(jnp.bfloat16),
                    preferred_element_type=jnp.float32)
        mean = jnp.mean(z, axis=0, keepdims=True)
        var = jnp.mean((z - mean) * (z - mean), axis=0, keepdims=True)
        zn = (z - mean) * jax.lax.rsqrt(var + BN_EPS)
        h = jnp.maximum(zn * g + be, 0.0)
    return jnp.dot(h.astype(jnp.bfloat16), w_cls.astype(jnp.bfloat16),
                   preferred_element_type=jnp.float32) + b_cls


def init_params(key, num_features, num_classes, depth):
    """Deterministic synthetic init matching the PyTorch module's shapes."""
    layer_params = []
    for _ in range(depth):
        key, kw, kb = jax.random.split(key, 3)
        bound = 1.0 / jnp.sqrt(num_features)
        # stored transposed vs PyTorch: (in, out)
        w = jax.random.uniform(kw, (num_features, num_features),
                               jnp.float32, -bound, bound)
        b = jax.random.uniform(kb, (1, num_features),
                               jnp.float32, -bound, bound)
        gamma = jnp.ones((1, num_features), jnp.float32)   # BN weight init = 1
        beta = jnp.zeros((1, num_features), jnp.float32)   # BN bias init = 0
        layer_params.append((w, b, gamma, beta))

    key, kc = jax.random.split(key)
    # nn.init.normal_(classifier.weight, std=0.001); bias = 0
    w_cls = 0.001 * jax.random.normal(kc, (num_features, num_classes),
                                      jnp.float32)
    b_cls = jnp.zeros((1, num_classes), jnp.float32)
    return layer_params, w_cls, b_cls


if __name__ == "__main__":
    B = 8               # batch
    NUM_FEATURES = 128  # small stand-in for the real 2048
    NUM_CLASSES = 16
    DEPTH = 2           # exercise the layer-streaming grid

    key = jax.random.PRNGKey(0)
    key, kx = jax.random.split(key)
    x = jax.random.normal(kx, (B, NUM_FEATURES), jnp.float32)

    layer_params, w_cls, b_cls = init_params(key, NUM_FEATURES, NUM_CLASSES,
                                             DEPTH)

    out = mlp_classifier_forward(x, layer_params, w_cls, b_cls)
    out = jax.block_until_ready(out)
    assert out.shape == (B, NUM_CLASSES), out.shape

    ref = jax.block_until_ready(_reference_forward(x, layer_params, w_cls,
                                                   b_cls))
    assert jnp.all(jnp.isfinite(out)), "non-finite logits"
    assert jnp.allclose(out, ref, rtol=2e-2, atol=2e-2), \
        float(jnp.max(jnp.abs(out - ref)))
    print("KERNEL_OK")
</pallas_src>

<mosaic_0001>
module attributes {stable_mosaic.version = 11 : i64} {
  func.func @_mlp_classifier_kernel(%arg0: i32, %arg1: memref<8x128xf32, #tpu.memory_space<vmem>>, %arg2: memref<1x128x128xbf16, #tpu.memory_space<vmem>>, %arg3: memref<1x1x128xf32, #tpu.memory_space<vmem>>, %arg4: memref<1x1x128xf32, #tpu.memory_space<vmem>>, %arg5: memref<128x16xbf16, #tpu.memory_space<vmem>>, %arg6: memref<1x16xf32, #tpu.memory_space<vmem>>, %arg7: memref<8x16xf32, #tpu.memory_space<vmem>>, %arg8: memref<8x128xf32, #tpu.memory_space<vmem>>) attributes {dimension_semantics = [#tpu.dimension_semantics<arbitrary>], iteration_bounds = array<i64: 2>, scalar_prefetch = 0 : i64, scratch_operands = 1 : i64, tpu.core_type = #tpu.core_type<tc>, window_params = [{pipeline_mode = #tpu.pipeline_mode<synchronous>, transform_indices = @transform_0, window_bounds = array<i64: 8, 128>}, {transform_indices = @transform_1, window_bounds = array<i64: 1, 128, 128>}, {transform_indices = @transform_2, window_bounds = array<i64: 1, 1, 128>}, {transform_indices = @transform_3, window_bounds = array<i64: 1, 1, 128>}, {pipeline_mode = #tpu.pipeline_mode<synchronous>, transform_indices = @transform_4, window_bounds = array<i64: 128, 16>}, {pipeline_mode = #tpu.pipeline_mode<synchronous>, transform_indices = @transform_5, window_bounds = array<i64: 1, 16>}, {pipeline_mode = #tpu.pipeline_mode<synchronous>, transform_indices = @transform_6, window_bounds = array<i64: 8, 16>}]} {
    %c0_i32 = arith.constant 0 : i32
    %0 = arith.cmpi eq, %arg0, %c0_i32 : i32
    %1 = arith.extui %0 : i1 to i32
    %c0_i32_0 = arith.constant 0 : i32
    %2 = arith.cmpi ne, %1, %c0_i32_0 : i32
    scf.if %2 {
      %c0_21 = arith.constant 0 : index
      %c0_22 = arith.constant 0 : index
      %41 = vector.load %arg1[%c0_21, %c0_22] : memref<8x128xf32, #tpu.memory_space<vmem>>, vector<8x128xf32>
      %c0_23 = arith.constant 0 : index
      %c0_24 = arith.constant 0 : index
      %42 = vector.load %arg8[%c0_23, %c0_24] : memref<8x128xf32, #tpu.memory_space<vmem>>, vector<8x128xf32>
      tpu.vector_store %arg8[%c0_23, %c0_24], %41 {strides = array<i32>} : memref<8x128xf32, #tpu.memory_space<vmem>>, vector<8x128xf32>,
    } else {
    }
    %c0 = arith.constant 0 : index
    %c0_1 = arith.constant 0 : index
    %3 = vector.load %arg8[%c0, %c0_1] : memref<8x128xf32, #tpu.memory_space<vmem>>, vector<8x128xf32>
    %4 = arith.truncf %3 : vector<8x128xf32> to vector<8x128xbf16>
    %c0_2 = arith.constant 0 : index
    %c0_3 = arith.constant 0 : index
    %c0_4 = arith.constant 0 : index
    %5 = vector.load %arg2[%c0_2, %c0_3, %c0_4] : memref<1x128x128xbf16, #tpu.memory_space<vmem>>, vector<1x128x128xbf16>
    %6 = vector.shape_cast %5 : vector<1x128x128xbf16> to vector<128x128xbf16>
    %cst = arith.constant dense<0.000000e+00> : vector<8x128xf32>
    %7 = tpu.matmul %4, %6, %cst {dimension_numbers = #tpu.dot_dimension_numbers<[1], [0], [0], [1], [0, 0, 1, 1], [], []>} : vector<8x128xbf16>, vector<128x128xbf16>, vector<8x128xf32> -> vector<8x128xf32>
    %cst_5 = arith.constant dense<0.000000e+00> : vector<128xf32>
    %8 = vector.multi_reduction <add>, %7, %cst_5 [0] : vector<8x128xf32> to vector<128xf32>
    %9 = vector.shape_cast %8 : vector<128xf32> to vector<1x128xf32>
    %cst_6 = arith.constant 8.000000e+00 : f32
    %10 = vector.broadcast %cst_6 : f32 to vector<1x128xf32>
    %11 = arith.divf %9, %10 : vector<1x128xf32>
    %12 = arith.mulf %7, %7 : vector<8x128xf32>
    %cst_7 = arith.constant dense<0.000000e+00> : vector<128xf32>
    %13 = vector.multi_reduction <add>, %12, %cst_7 [0] : vector<8x128xf32> to vector<128xf32>
    %14 = vector.shape_cast %13 : vector<128xf32> to vector<1x128xf32>
    %cst_8 = arith.constant 8.000000e+00 : f32
    %15 = vector.broadcast %cst_8 : f32 to vector<1x128xf32>
    %16 = arith.divf %14, %15 : vector<1x128xf32>
    %17 = arith.mulf %11, %11 : vector<1x128xf32>
    %18 = arith.subf %16, %17 : vector<1x128xf32>
    %cst_9 = arith.constant 0.000000e+00 : f32
    %19 = vector.broadcast %cst_9 : f32 to vector<1x128xf32>
    %20 = arith.maximumf %18, %19 : vector<1x128xf32>
    %c0_10 = arith.constant 0 : index
    %c0_11 = arith.constant 0 : index
    %c0_12 = arith.constant 0 : index
    %21 = vector.load %arg3[%c0_10, %c0_11, %c0_12] : memref<1x1x128xf32, #tpu.memory_space<vmem>>, vector<1x1x128xf32>
    %22 = vector.shape_cast %21 : vector<1x1x128xf32> to vector<1x128xf32>
    %cst_13 = arith.constant 9.99999974E-6 : f32
    %23 = vector.broadcast %cst_13 : f32 to vector<1x128xf32>
    %24 = arith.addf %20, %23 : vector<1x128xf32>
    %25 = math.rsqrt %24 : vector<1x128xf32>
    %26 = arith.mulf %22, %25 : vector<1x128xf32>
    %c0_14 = arith.constant 0 : index
    %c0_15 = arith.constant 0 : index
    %c0_16 = arith.constant 0 : index
    %27 = vector.load %arg4[%c0_14, %c0_15, %c0_16] : memref<1x1x128xf32, #tpu.memory_space<vmem>>, vector<1x1x128xf32>
    %28 = vector.shape_cast %27 : vector<1x1x128xf32> to vector<1x128xf32>
    %29 = arith.mulf %11, %26 : vector<1x128xf32>
    %30 = arith.subf %28, %29 : vector<1x128xf32>
    %31 = vector.broadcast %26 : vector<1x128xf32> to vector<8x128xf32>
    %32 = arith.mulf %7, %31 : vector<8x128xf32>
    %33 = vector.broadcast %30 : vector<1x128xf32> to vector<8x128xf32>
    %34 = arith.addf %32, %33 : vector<8x128xf32>
    %cst_17 = arith.constant 0.000000e+00 : f32
    %35 = vector.broadcast %cst_17 : f32 to vector<8x128xf32>
    %36 = arith.maximumf %34, %35 : vector<8x128xf32>
    %c0_18 = arith.constant 0 : index
    %c0_19 = arith.constant 0 : index
    %37 = vector.load %arg8[%c0_18, %c0_19] : memref<8x128xf32, #tpu.memory_space<vmem>>, vector<8x128xf32>
    tpu.vector_store %arg8[%c0_18, %c0_19], %36 {strides = array<i32>} : memref<8x128xf32, #tpu.memory_space<vmem>>, vector<8x128xf32>,
    %c1_i32 = arith.constant 1 : i32
    %38 = arith.cmpi eq, %arg0, %c1_i32 : i32
    %39 = arith.extui %38 : i1 to i32
    %c0_i32_20 = arith.constant 0 : i32
    %40 = arith.cmpi ne, %39, %c0_i32_20 : i32
    scf.if %40 {
      %c0_21 = arith.constant 0 : index
      %c0_22 = arith.constant 0 : index
      %41 = vector.load %arg8[%c0_21, %c0_22] : memref<8x128xf32, #tpu.memory_space<vmem>>, vector<8x128xf32>
      %42 = arith.truncf %41 : vector<8x128xf32> to vector<8x128xbf16>
      %c0_23 = arith.constant 0 : index
      %c0_24 = arith.constant 0 : index
      %43 = vector.load %arg5[%c0_23, %c0_24] : memref<128x16xbf16, #tpu.memory_space<vmem>>, vector<128x16xbf16>
      %cst_25 = arith.constant dense<0.000000e+00> : vector<8x16xf32>
      %44 = tpu.matmul %42, %43, %cst_25 {dimension_numbers = #tpu.dot_dimension_numbers<[1], [0], [0], [1], [0, 0, 1, 1], [], []>} : vector<8x128xbf16>, vector<128x16xbf16>, vector<8x16xf32> -> vector<8x16xf32>
      %c0_26 = arith.constant 0 : index
      %c0_27 = arith.constant 0 : index
      %45 = vector.load %arg6[%c0_26, %c0_27] : memref<1x16xf32, #tpu.memory_space<vmem>>, vector<1x16xf32>
      %46 = vector.broadcast %45 : vector<1x16xf32> to vector<8x16xf32>
      %47 = arith.addf %44, %46 : vector<8x16xf32>
      %c0_28 = arith.constant 0 : index
      %c0_29 = arith.constant 0 : index
      %48 = vector.load %arg7[%c0_28, %c0_29] : memref<8x16xf32, #tpu.memory_space<vmem>>, vector<8x16xf32>
      tpu.vector_store %arg7[%c0_28, %c0_29], %47 {strides = array<i32>} : memref<8x16xf32, #tpu.memory_space<vmem>>, vector<8x16xf32>,
    } else {
    }
    return
  }
  func.func @transform_0(%arg0: i32) -> (i32, i32) {
    %c0_i32 = arith.constant 0 : i32
    %c0_i32_0 = arith.constant 0 : i32
    %c0_i32_1 = arith.constant 0 : i32
    return %c0_i32, %c0_i32_0 : i32, i32
  }
  func.func @transform_1(%arg0: i32) -> (i32, i32, i32) {
    %c0_i32 = arith.constant 0 : i32
    %c0_i32_0 = arith.constant 0 : i32
    %c0_i32_1 = arith.constant 0 : i32
    return %arg0, %c0_i32, %c0_i32_0 : i32, i32, i32
  }
  func.func @transform_2(%arg0: i32) -> (i32, i32, i32) {
    %c0_i32 = arith.constant 0 : i32
    %c0_i32_0 = arith.constant 0 : i32
    %c0_i32_1 = arith.constant 0 : i32
    return %arg0, %c0_i32, %c0_i32_0 : i32, i32, i32
  }
  func.func @transform_3(%arg0: i32) -> (i32, i32, i32) {
    %c0_i32 = arith.constant 0 : i32
    %c0_i32_0 = arith.constant 0 : i32
    %c0_i32_1 = arith.constant 0 : i32
    return %arg0, %c0_i32, %c0_i32_0 : i32, i32, i32
  }
  func.func @transform_4(%arg0: i32) -> (i32, i32) {
    %c0_i32 = arith.constant 0 : i32
    %c0_i32_0 = arith.constant 0 : i32
    %c0_i32_1 = arith.constant 0 : i32
    return %c0_i32, %c0_i32_0 : i32, i32
  }
  func.func @transform_5(%arg0: i32) -> (i32, i32) {
    %c0_i32 = arith.constant 0 : i32
    %c0_i32_0 = arith.constant 0 : i32
    %c0_i32_1 = arith.constant 0 : i32
    return %c0_i32, %c0_i32_0 : i32, i32
  }
  func.func @transform_6(%arg0: i32) -> (i32, i32) {
    %c0_i32 = arith.constant 0 : i32
    %c0_i32_0 = arith.constant 0 : i32
    %c0_i32_1 = arith.constant 0 : i32
    return %c0_i32, %c0_i32_0 : i32, i32
  }
}

</mosaic_0001>

<llo_original>
// kernel: tpu_custom_call.1
$region0: #{tpu_custom_call.1}
  #allocation0 [shape = 'u32[]', space=smem, size = 0x4, offset = 0x4, fixed_abs, tag = 'smem constant byte address 0x4 - core index']
  #allocation1 [shape = 'u32[144,128]{1,0:T(1,128)}', space=vmem, size = 0x12000, scoped, tag = 'internal scratch']
  #allocation2 [shape = 'f32[8,128]{1,0:T(8,128)}', space=vmem, size = 0x1000, scoped, tag = 'scratch operand']
  %s0 = inlined_call_operand.vmem [shape: f32[8,128], index: 0, kind: input, shape index: {}]
  %s1 = inlined_call_operand.hbm [shape: bf16[2,128,128], index: 1, kind: input, shape index: {}]
  %s2 = inlined_call_operand.vmem [shape: f32[2,1,128], index: 2, kind: input, shape index: {}]
  %s3 = inlined_call_operand.vmem [shape: f32[2,1,128], index: 3, kind: input, shape index: {}]
  %s4 = inlined_call_operand.vmem [shape: bf16[128,16], index: 4, kind: input, shape index: {}]
  %s5 = inlined_call_operand.vmem [shape: f32[1,16], index: 5, kind: input, shape index: {}]
  %s6 = inlined_call_operand.hbm [shape: f32[8,16], index: 6, kind: output, shape index: {}]
  %s7 = sld [smem:[#allocation0]]
  $region69: #{tpu_custom_call.1} parent=0
    _
  %s9 = ssub.s32 1, %s7
  %s10 = scalar_select 0, %s9, %s7
  $region1: #{tpu_custom_call.1} parent=0
    #allocation3 [shape = 'u8[65536]{0}', space=vmem, size = 0x10000, scoped, tag = 'input window, operand 1']
    #allocation4 [shape = 's32[2]{0}', space=sflag, size = 0x8, scoped, tag = 'scoped memory for tpu_custom_call.1']
    #allocation5 [shape = 's32[2]{0}', space=sflag, size = 0x8, scoped, tag = 'scoped memory for tpu_custom_call.1']
    #allocation6 [shape = 'u8[4096]{0}', space=vmem, size = 0x1000, scoped, tag = 'output window, operand 0, single buffered']
    %11 = vsyncpa [#allocation4], 0
    %s12 = scalar_lea.sflag [#allocation4], 1
    %13 = vsyncpa %s12, 0
    %14 = vsyncpa [#allocation5], 0
    loop: start=0, step=1, limit=4
    $region2: #{tpu_custom_call.1} parent=1 // loop_pre_header
      _
    $region3: #{tpu_custom_call.1} parent=1 // loop_header
      %s16 = sphi 0, %s20
      %p17 = scmp.ge.s32.totalorder %s16, 4
      %s24 = sphi 0, %s24
      %s26 = sphi 0, %s24
      %s27 = sphi 0, %s26
      %s41 = sphi 0, %s27
      %s47 = sphi 0, %s49
      %s50 = sphi 0, %s47
      %s51 = sphi 0, %s50
      %s67 = sphi 0, %s51
      %s73 = sphi 0, %s75
      %s76 = sphi 0, %s73
      %s77 = sphi 0, %s76
      %s93 = sphi 0, %s77
      %s99 = sphi 0, %s101
      %s102 = sphi 0, %s99
      %s103 = sphi 0, %s102
      %s119 = sphi 0, %s103
      %s123 = sphi 0, %s123
      %s125 = sphi 0, %s123
      %s126 = sphi 0, %s125
      %s140 = sphi 0, %s126
      %s144 = sphi 0, %s144
      %s146 = sphi 0, %s144
      %s147 = sphi 0, %s146
      %s161 = sphi 0, %s147
      %s165 = sphi 0, %s165
      %s167 = sphi 0, %s165
      %s168 = sphi 0, %s167
      %s182 = sphi 0, %s168
    $region4: #{tpu_custom_call.1} parent=1 // loop_header_branch
      %19 = sbr.rel (%p17) target = $region8
    $region5: #{tpu_custom_call.1} parent=1 // loop_body
      %s21 = ssub.s32 %s16, 1
      %s22 = ssub.s32 %s16, 2
      %s23 = sadd.s32 %s16, 1
      %s25 = sadd.s32 %s24, 1
      %p28 = scmp.eq.s32.totalorder %s16, 1
      %p29 = scmp.ne.s32.totalorder %s24, %s26
      %p30 = scmp.eq.s32.totalorder %s16, 0
      %p31 = por %p29, %p30
      %p32 = scmp.ne.s32.totalorder %s24, %s26
      %p33 = scmp.eq.s32.totalorder %s21, 1
      %p34 = por %p32, %p33
      %p35 = scmp.ne.s32.totalorder %s26, %s27
      %p36 = scmp.eq.s32.totalorder %s21, 0
      %p37 = por %p35, %p36
      %p38 = scmp.ne.s32.totalorder %s26, %s27
      %p39 = scmp.eq.s32.totalorder %s22, 1
      %p40 = por %p38, %p39
      %p42 = scmp.ne.s32.totalorder %s27, %s41
      %p43 = scmp.eq.s32.totalorder %s22, 0
      %p44 = por %p42, %p43
      %s45 = ssub.s32 %s16, %s23
      %p46 = scmp.eq.s32.totalorder %s45, 0
      %s48 = sadd.s32 %s47, 1
      %s49 = scalar_select %p46, %s47, %s48
      %p52 = pneg %p46
      %p53 = scmp.eq.s32.totalorder %s16, 1
      %p54 = por %p52, %p53
      %p55 = scmp.ne.s32.totalorder %s47, %s50
      %p56 = scmp.eq.s32.totalorder %s16, 0
      %p57 = por %p55, %p56
      %p58 = scmp.ne.s32.totalorder %s47, %s50
      %p59 = scmp.eq.s32.totalorder %s21, 1
      %p60 = por %p58, %p59
      %p61 = scmp.ne.s32.totalorder %s50, %s51
      %p62 = scmp.eq.s32.totalorder %s21, 0
      %p63 = por %p61, %p62
      %p64 = scmp.ne.s32.totalorder %s50, %s51
      %p65 = scmp.eq.s32.totalorder %s22, 1
      %p66 = por %p64, %p65
      %p68 = scmp.ne.s32.totalorder %s51, %s67
      %p69 = scmp.eq.s32.totalorder %s22, 0
      %p70 = por %p68, %p69
      %s71 = ssub.s32 %s16, %s23
      %p72 = scmp.eq.s32.totalorder %s71, 0
      %s74 = sadd.s32 %s73, 1
      %s75 = scalar_select %p72, %s73, %s74
      %p78 = pneg %p72
      %p79 = scmp.eq.s32.totalorder %s16, 1
      %p80 = por %p78, %p79
      %p81 = scmp.ne.s32.totalorder %s73, %s76
      %p82 = scmp.eq.s32.totalorder %s16, 0
      %p83 = por %p81, %p82
      %p84 = scmp.ne.s32.totalorder %s73, %s76
      %p85 = scmp.eq.s32.totalorder %s21, 1
      %p86 = por %p84, %p85
      %p87 = scmp.ne.s32.totalorder %s76, %s77
      %p88 = scmp.eq.s32.totalorder %s21, 0
      %p89 = por %p87, %p88
      %p90 = scmp.ne.s32.totalorder %s76, %s77
      %p91 = scmp.eq.s32.totalorder %s22, 1
      %p92 = por %p90, %p91
      %p94 = scmp.ne.s32.totalorder %s77, %s93
      %p95 = scmp.eq.s32.totalorder %s22, 0
      %p96 = por %p94, %p95
      %s97 = ssub.s32 %s16, %s23
      %p98 = scmp.eq.s32.totalorder %s97, 0
      %s100 = sadd.s32 %s99, 1
      %s101 = scalar_select %p98, %s99, %s100
      %p104 = pneg %p98
      %p105 = scmp.eq.s32.totalorder %s16, 1
      %p106 = por %p104, %p105
      %p107 = scmp.ne.s32.totalorder %s99, %s102
      %p108 = scmp.eq.s32.totalorder %s16, 0
      %p109 = por %p107, %p108
      %p110 = scmp.ne.s32.totalorder %s99, %s102
      %p111 = scmp.eq.s32.totalorder %s21, 1
      %p112 = por %p110, %p111
      %p113 = scmp.ne.s32.totalorder %s102, %s103
      %p114 = scmp.eq.s32.totalorder %s21, 0
      %p115 = por %p113, %p114
      %p116 = scmp.ne.s32.totalorder %s102, %s103
      %p117 = scmp.eq.s32.totalorder %s22, 1
      %p118 = por %p116, %p117
      %p120 = scmp.ne.s32.totalorder %s103, %s119
      %p121 = scmp.eq.s32.totalorder %s22, 0
      %p122 = por %p120, %p121
      %s124 = sadd.s32 %s123, 1
      %p127 = scmp.eq.s32.totalorder %s16, 1
      %p128 = scmp.ne.s32.totalorder %s123, %s125
      %p129 = scmp.eq.s32.totalorder %s16, 0
      %p130 = por %p128, %p129
      %p131 = scmp.ne.s32.totalorder %s123, %s125
      %p132 = scmp.eq.s32.totalorder %s21, 1
      %p133 = por %p131, %p132
      %p134 = scmp.ne.s32.totalorder %s125, %s126
      %p135 = scmp.eq.s32.totalorder %s21, 0
      %p136 = por %p134, %p135
      %p137 = scmp.ne.s32.totalorder %s125, %s126
      %p138 = scmp.eq.s32.totalorder %s22, 1
      %p139 = por %p137, %p138
      %p141 = scmp.ne.s32.totalorder %s126, %s140
      %p142 = scmp.eq.s32.totalorder %s22, 0
      %p143 = por %p141, %p142
      %s145 = sadd.s32 %s144, 1
      %p148 = scmp.eq.s32.totalorder %s16, 1
      %p149 = scmp.ne.s32.totalorder %s144, %s146
      %p150 = scmp.eq.s32.totalorder %s16, 0
      %p151 = por %p149, %p150
      %p152 = scmp.ne.s32.totalorder %s144, %s146
      %p153 = scmp.eq.s32.totalorder %s21, 1
      %p154 = por %p152, %p153
      %p155 = scmp.ne.s32.totalorder %s146, %s147
      %p156 = scmp.eq.s32.totalorder %s21, 0
      %p157 = por %p155, %p156
      %p158 = scmp.ne.s32.totalorder %s146, %s147
      %p159 = scmp.eq.s32.totalorder %s22, 1
      %p160 = por %p158, %p159
      %p162 = scmp.ne.s32.totalorder %s147, %s161
      %p163 = scmp.eq.s32.totalorder %s22, 0
      %p164 = por %p162, %p163
      %s166 = sadd.s32 %s165, 1
      %p169 = scmp.eq.s32.totalorder %s16, 1
      %p170 = scmp.ne.s32.totalorder %s165, %s167
      %p171 = scmp.eq.s32.totalorder %s16, 0
      %p172 = por %p170, %p171
      %p173 = scmp.ne.s32.totalorder %s165, %s167
      %p174 = scmp.eq.s32.totalorder %s21, 1
      %p175 = por %p173, %p174
      %p176 = scmp.ne.s32.totalorder %s167, %s168
      %p177 = scmp.eq.s32.totalorder %s21, 0
      %p178 = por %p176, %p177
      %p179 = scmp.ne.s32.totalorder %s167, %s168
      %p180 = scmp.eq.s32.totalorder %s22, 1
      %p181 = por %p179, %p180
      %p183 = scmp.ne.s32.totalorder %s168, %s182
      %p184 = scmp.eq.s32.totalorder %s22, 0
      %p185 = por %p183, %p184
      %p186 = scmp.le.s32.totalorder 1, %s16
      %p187 = scmp.lt.s32.totalorder %s16, 3
      %p188 = pnand %p186, %p187
      %p189 = pneg %p188
      // Predicated region
      $region9: #{tpu_custom_call.1} parent=5 // pred_check
        _
      $region10: #{tpu_custom_call.1} parent=5 // pred_check_branch
        %191 = sbr.rel (%p188) target = $region12
      $region11: #{tpu_custom_call.1} parent=5 // pred_region
        %s192 = ssub.s32 %s16, 1
        // Predicated region
        $region13: #{tpu_custom_call.1} parent=11 // pred_check
          %p193 = pneg %p37
        $region14: #{tpu_custom_call.1} parent=11 // pred_check_branch
          %195 = sbr.rel (%p193) target = $region16
        $region15: #{tpu_custom_call.1} parent=11 // pred_region
          _
        $region16: #{tpu_custom_call.1} parent=11 // pred_fallthru
          _
        // Predicated region
        $region17: #{tpu_custom_call.1} parent=11 // pred_check
          %p196 = pneg %p136
        $region18: #{tpu_custom_call.1} parent=11 // pred_check_branch
          %198 = sbr.rel (%p196) target = $region20
        $region19: #{tpu_custom_call.1} parent=11 // pred_region
          _
        $region20: #{tpu_custom_call.1} parent=11 // pred_fallthru
          _
        // Predicated region
        $region21: #{tpu_custom_call.1} parent=11 // pred_check
          %p199 = pneg %p157
        $region22: #{tpu_custom_call.1} parent=11 // pred_check_branch
          %201 = sbr.rel (%p199) target = $region24
        $region23: #{tpu_custom_call.1} parent=11 // pred_region
          _
        $region24: #{tpu_custom_call.1} parent=11 // pred_fallthru
          _
      $region12: #{tpu_custom_call.1} parent=5 // pred_fallthru
        _
      %p202 = scmp.lt.s32.totalorder %s16, 2
      // Predicated region
      $region25: #{tpu_custom_call.1} parent=5 // pred_check
        %p203 = pneg %p202
      $region26: #{tpu_custom_call.1} parent=5 // pred_check_branch
        %205 = sbr.rel (%p203) target = $region28
      $region27: #{tpu_custom_call.1} parent=5 // pred_region
        // Predicated region
        $region29: #{tpu_custom_call.1} parent=27 // pred_check
          %p206 = pneg %p57
        $region30: #{tpu_custom_call.1} parent=27 // pred_check_branch
          %208 = sbr.rel (%p206) target = $region32
        $region31: #{tpu_custom_call.1} parent=27 // pred_region
          %s209 = sand.u32 %s47, 1
          %s210 = scalar_lea.sflag [#allocation4], %s209
          %s211 = sand.u32 %s47, 1
          %s212 = smul.addr %s211, 64
          %s213 = scalar_lea.vmem [#allocation3], %s212
          %s215 = ssub.s32 1024, 1024
          %216 = vsyncadd %s210, %s215
          %s217 = smul.addr %s16, 16
          %s218 = smul.addr %s217, 64
          %s219 = scalar_lea.hbm %s1, %s218
          %s220 = sshll.u32 %s213, 4
          %s221 = int_to_ptr.vmem [resolvable:$true] %s220
          %226 = dma.hbm_to_vmem [thread:$0]  %s219, 1024, %s221, %s210, 64, 64, 4
        $region32: #{tpu_custom_call.1} parent=27 // pred_fallthru
          _
        // Predicated region
        $region33: #{tpu_custom_call.1} parent=27 // pred_check
          %p227 = pneg %p83
        $region34: #{tpu_custom_call.1} parent=27 // pred_check_branch
          %229 = sbr.rel (%p227) target = $region36
        $region35: #{tpu_custom_call.1} parent=27 // pred_region
          %p230 = scmp.lt.s32.totalorder %s16, 1
          %s231 = scalar_select %p230, %s16, 1
          %s232 = scalar_lea.vmem %s2, %s231
        $region36: #{tpu_custom_call.1} parent=27 // pred_fallthru
          _
        // Predicated region
        $region37: #{tpu_custom_call.1} parent=27 // pred_check
          %p233 = pneg %p109
        $region38: #{tpu_custom_call.1} parent=27 // pred_check_branch
          %235 = sbr.rel (%p233) target = $region40
        $region39: #{tpu_custom_call.1} parent=27 // pred_region
          %p236 = scmp.lt.s32.totalorder %s16, 1
          %s237 = scalar_select %p236, %s16, 1
          %s238 = scalar_lea.vmem %s3, %s237
        $region40: #{tpu_custom_call.1} parent=27 // pred_fallthru
          _
      $region28: #{tpu_custom_call.1} parent=5 // pred_fallthru
        _
      %p239 = scmp.le.s32.totalorder 1, %s16
      %p240 = scmp.lt.s32.totalorder %s16, 3
      %p241 = pnand %p239, %p240
      %p242 = pneg %p241
      // Predicated region
      $region41: #{tpu_custom_call.1} parent=5 // pred_check
        _
      $region42: #{tpu_custom_call.1} parent=5 // pred_check_branch
        %244 = sbr.rel (%p241) target = $region44
      $region43: #{tpu_custom_call.1} parent=5 // pred_region
        %s245 = ssub.s32 %s16, 1
        %s246 = sand.u32 %s50, 1
        %s247 = scalar_lea.sflag [#allocation4], %s246
        %s248 = sand.u32 %s50, 1
        %s249 = smul.addr %s248, 64
        %s250 = scalar_lea.vmem [#allocation3], %s249
        // Predicated region
        $region45: #{tpu_custom_call.1} parent=43 // pred_check
          %p251 = pneg %p63
        $region46: #{tpu_custom_call.1} parent=43 // pred_check_branch
          %253 = sbr.rel (%p251) target = $region48
        $region47: #{tpu_custom_call.1} parent=43 // pred_region
          %254 = dma.done %s247, 1024
        $region48: #{tpu_custom_call.1} parent=43 // pred_fallthru
          _
        %p255 = pneg %p37
        %p256 = pneg %p34
        %s257 = sand.u32 %s50, 1
        %s258 = scalar_lea.sflag [#allocation4], %s257
        %s259 = sand.u32 %s50, 1
        %s260 = smul.addr %s259, 64
        %s261 = scalar_lea.vmem [#allocation3], %s260
        %p262 = pneg %p63
        %p263 = pneg %p60
        %p264 = scmp.lt.s32.totalorder %s21, 1
        %s265 = scalar_select %p264, %s21, 1
        %s266 = scalar_lea.vmem %s2, %s265
        %p267 = pneg %p89
        %p268 = pneg %p86
        %p269 = scmp.lt.s32.totalorder %s21, 1
        %s270 = scalar_select %p269, %s21, 1
        %s271 = scalar_lea.vmem %s3, %s270
        %p272 = pneg %p115
        %p273 = pneg %p112
        %p274 = pneg %p136
        %p275 = pneg %p133
        %p276 = pneg %p157
        %p277 = pneg %p154
        %p278 = pneg %p178
        %p279 = pneg %p175
        %p280 = scmp.lt.s32.totalorder %s21, 1
        %s281 = scalar_select %p280, %s21, 1
        %s282 = scalar_lea.vmem %s2, %s281
        %p283 = scmp.lt.s32.totalorder %s21, 1
        %s284 = scalar_select %p283, %s21, 1
        %s285 = scalar_lea.vmem %s3, %s284
        %p287 = scmp.eq.s32.totalorder %s21, 0
        // Predicated region
        $region49: #{tpu_custom_call.1} parent=43 // pred_check
          %p288 = pneg %p287
        $region50: #{tpu_custom_call.1} parent=43 // pred_check_branch
          %290 = sbr.rel (%p288) target = $region52
        $region51: #{tpu_custom_call.1} parent=43 // pred_region
          %v291 = vld [vmem:[%s0] sm:$0xff]
          %292 = vst [vmem:[#allocation2] sm:$0xff] %v291
        $region52: #{tpu_custom_call.1} parent=43 // pred_fallthru
          _
        %v293 = vld [vmem:[#allocation2] sm:$0xff]
        %v294 = vpack.c.bf16 %v293, %v293
        %v295 = vld [vmem:[%s250] sm:$0xf]
        %v296 = vld [vmem:[%s250 + $0x4] sm:$0xf]
        %v297 = vld [vmem:[%s250 + $0x8] sm:$0xf]
        %v298 = vld [vmem:[%s250 + $0xc] sm:$0xf]
        %v299 = vld [vmem:[%s250 + $0x10] sm:$0xf]
        %v300 = vld [vmem:[%s250 + $0x14] sm:$0xf]
        %v301 = vld [vmem:[%s250 + $0x18] sm:$0xf]
        %v302 = vld [vmem:[%s250 + $0x1c] sm:$0xf]
        %v303 = vld [vmem:[%s250 + $0x20] sm:$0xf]
        %v304 = vld [vmem:[%s250 + $0x24] sm:$0xf]
        %v305 = vld [vmem:[%s250 + $0x28] sm:$0xf]
        %v306 = vld [vmem:[%s250 + $0x2c] sm:$0xf]
        %v307 = vld [vmem:[%s250 + $0x30] sm:$0xf]
        %v308 = vld [vmem:[%s250 + $0x34] sm:$0xf]
        %v309 = vld [vmem:[%s250 + $0x38] sm:$0xf]
        %v310 = vld [vmem:[%s250 + $0x3c] sm:$0xf]
        %v327 = vunpack.c.l.b16 %v295
        %v328 = vunpack.c.l.b16 %v296
        %v329 = vunpack.c.l.b16 %v297
        %v330 = vunpack.c.l.b16 %v298
        %v331 = vunpack.c.l.b16 %v299
        %v332 = vunpack.c.l.b16 %v300
        %v333 = vunpack.c.l.b16 %v301
        %v334 = vunpack.c.l.b16 %v302
        %v335 = vunpack.c.l.b16 %v303
        %v336 = vunpack.c.l.b16 %v304
        %v337 = vunpack.c.l.b16 %v305
        %v338 = vunpack.c.l.b16 %v306
        %v339 = vunpack.c.l.b16 %v307
        %v340 = vunpack.c.l.b16 %v308
        %v341 = vunpack.c.l.b16 %v309
        %v342 = vunpack.c.l.b16 %v310
        %v343 = vpack.c.b16 %v328, %v327
        %v344 = vpack.c.b16 %v330, %v329
        %v345 = vpack.c.b16 %v332, %v331
        %v346 = vpack.c.b16 %v334, %v333
        %v347 = vpack.c.b16 %v336, %v335
        %v348 = vpack.c.b16 %v338, %v337
        %v349 = vpack.c.b16 %v340, %v339
        %v350 = vpack.c.b16 %v342, %v341
        %359 = vmatprep.subr.bf16.mxu0 0
        %360 = vmatpush1.bf16.msra.mxu0 %v350
        %361 = vmatprep.subr.bf16.mxu0 0
        %362 = vmatpush1.bf16.msra.mxu0 %v349
        %363 = vmatprep.subr.bf16.mxu0 0
        %364 = vmatpush1.bf16.msra.mxu0 %v348
        %365 = vmatprep.subr.bf16.mxu0 0
        %366 = vmatpush1.bf16.msra.mxu0 %v347
        %367 = vmatprep.subr.bf16.mxu0 0
        %368 = vmatpush1.bf16.msra.mxu0 %v346
        %369 = vmatprep.subr.bf16.mxu0 0
        %370 = vmatpush1.bf16.msra.mxu0 %v345
        %371 = vmatprep.subr.bf16.mxu0 0
        %372 = vmatpush1.bf16.msra.mxu0 %v344
        %373 = vmatprep.subr.bf16.mxu0 0
        %374 = vmatpush1.bf16.msra.mxu0 %v343
        %375 = vmatprep.subr.bf16.mxu0 0
        %376 = vmatpush2.bf16.msra.mxu0 0
        %377 = vmatprep.subr.bf16.mxu0 0
        %378 = vmatpush2.bf16.msra.mxu0 0
        %379 = vmatprep.subr.bf16.mxu0 0
        %380 = vmatpush2.bf16.msra.mxu0 0
        %381 = vmatprep.subr.bf16.mxu0 0
        %382 = vmatpush2.bf16.msra.mxu0 0
        %383 = vmatprep.subr.bf16.mxu0 0
        %384 = vmatpush2.bf16.msra.mxu0 0
        %385 = vmatprep.subr.bf16.mxu0 0
        %386 = vmatpush2.bf16.msra.mxu0 0
        %387 = vmatprep.subr.bf16.mxu0 0
        %388 = vmatpush2.bf16.msra.mxu0 0
        %389 = vmatprep.subr.bf16.mxu0 0
        %390 = vmatpush2.bf16.msra.mxu0 0
        %391 = vmatprep.mubr.bf16.mxu0 0
        %392 = vmatmul.mubr.bf16.gmra.mxu0 %v294
        %v393 = vpop.f32.mrf.mxu0
        %v394 = vadd.f32 0.0, %v393
        %v395 = vpop.f32.mrf.mxu0
        %v396 = vpop.f32.mrf.mxu0
        %v397 = vpop.f32.mrf.mxu0
        %398 = vdwg.mxu0
        %v399 = vrot.slane %v394, 4
        %v400 = vadd.f32 %v394, %v399
        %v401 = vrot.slane %v400, 2
        %v402 = vadd.f32 %v400, %v401
        %v403 = vrot.slane %v402, 1
        %v404 = vadd.f32 %v402, %v403
        %v405 = vrcp.pop 8.0
        %v406 = vmul.f32 %v404, %v405
        %v407 = vmul.f32 %v394, %v394
        %v408 = vrot.slane %v407, 4
        %v409 = vadd.f32 %v407, %v408
        %v410 = vrot.slane %v409, 2
        %v411 = vadd.f32 %v409, %v410
        %v412 = vrot.slane %v411, 1
        %v413 = vadd.f32 %v411, %v412
        %v414 = vmul.f32 %v413, %v405
        %v415 = vmul.f32 %v406, %v406
        %v416 = vsub.f32 %v414, %v415
        %v417 = vmax.f32 %v416, 0.0
        %v418 = vld [vmem:[%s282] sm:$0x1]
        %v419 = vadd.f32 %v417, 1e-05
        %v420 = vrsqrt.pop %v419
        %v421 = vmul.f32 %v418, %v420
        %v422 = vld [vmem:[%s285] sm:$0x1]
        %v423 = vmul.f32 %v406, %v421
        %v424 = vsub.f32 %v422, %v423
        %v426 = vlaneseq
        %v427 = vshrl.u32 %v426, 7
        %v428 = vsub.s32 0, %v427
        %v429 = vrot.slane %v421, %v428
        %v431 = vmul.f32 %v394, %v429
        %v433 = vlaneseq
        %v434 = vshrl.u32 %v433, 7
        %v435 = vsub.s32 0, %v434
        %v436 = vrot.slane %v424, %v435
        %v438 = vadd.f32 %v431, %v436
        %v439 = vmax.f32 %v438, 0.0
        %440 = vst [vmem:[#allocation2] sm:$0xff] %v439
        %p441 = scmp.eq.s32.totalorder %s21, 1
        // Predicated region
        $region53: #{tpu_custom_call.1} parent=43 // pred_check
          %p442 = pneg %p441
        $region54: #{tpu_custom_call.1} parent=43 // pred_check_branch
          %444 = sbr.rel (%p442) target = $region56
        $region55: #{tpu_custom_call.1} parent=43 // pred_region
          %v445 = vld [vmem:[#allocation2] sm:$0xff]
          %v446 = vpack.c.bf16 %v445, %v445
          %v447 = vld [vmem:[%s4] sm:$0xf]
          %v448 = vld [vmem:[%s4 + $0x4] sm:$0xf]
          %v449 = vld [vmem:[%s4 + $0x8] sm:$0xf]
          %v450 = vld [vmem:[%s4 + $0xc] sm:$0xf]
          %v451 = vld [vmem:[%s4 + $0x10] sm:$0xf]
          %v452 = vld [vmem:[%s4 + $0x14] sm:$0xf]
          %v453 = vld [vmem:[%s4 + $0x18] sm:$0xf]
          %v454 = vld [vmem:[%s4 + $0x1c] sm:$0xf]
          %v455 = vld [vmem:[%s4 + $0x20] sm:$0xf]
          %v456 = vld [vmem:[%s4 + $0x24] sm:$0xf]
          %v457 = vld [vmem:[%s4 + $0x28] sm:$0xf]
          %v458 = vld [vmem:[%s4 + $0x2c] sm:$0xf]
          %v459 = vld [vmem:[%s4 + $0x30] sm:$0xf]
          %v460 = vld [vmem:[%s4 + $0x34] sm:$0xf]
          %v461 = vld [vmem:[%s4 + $0x38] sm:$0xf]
          %v462 = vld [vmem:[%s4 + $0x3c] sm:$0xf]
          %v463 = vld [vmem:[%s5] sm:$0x1]
          %v465 = vlaneseq
          %v466 = vshrl.u32 %v465, 7
          %v467 = vsub.s32 0, %v466
          %v468 = vrot.slane %v463, %v467
          %v486 = vunpack.c.l.b16 %v447
          %v487 = vunpack.c.l.b16 %v448
          %v488 = vunpack.c.l.b16 %v449
          %v489 = vunpack.c.l.b16 %v450
          %v490 = vunpack.c.l.b16 %v451
          %v491 = vunpack.c.l.b16 %v452
          %v492 = vunpack.c.l.b16 %v453
          %v493 = vunpack.c.l.b16 %v454
          %v494 = vunpack.c.l.b16 %v455
          %v495 = vunpack.c.l.b16 %v456
          %v496 = vunpack.c.l.b16 %v457
          %v497 = vunpack.c.l.b16 %v458
          %v498 = vunpack.c.l.b16 %v459
          %v499 = vunpack.c.l.b16 %v460
          %v500 = vunpack.c.l.b16 %v461
          %v501 = vunpack.c.l.b16 %v462
          %v502 = vpack.c.b16 %v487, %v486
          %v503 = vpack.c.b16 %v489, %v488
          %v504 = vpack.c.b16 %v491, %v490
          %v505 = vpack.c.b16 %v493, %v492
          %v506 = vpack.c.b16 %v495, %v494
          %v507 = vpack.c.b16 %v497, %v496
          %v508 = vpack.c.b16 %v499, %v498
          %v509 = vpack.c.b16 %v501, %v500
          %518 = vmatprep.subr.bf16.mxu0 0
          %519 = vmatpush1.bf16.msra.mxu0 %v509
          %520 = vmatprep.subr.bf16.mxu0 0
          %521 = vmatpush1.bf16.msra.mxu0 %v508
          %522 = vmatprep.subr.bf16.mxu0 0
          %523 = vmatpush1.bf16.msra.mxu0 %v507
          %524 = vmatprep.subr.bf16.mxu0 0
          %525 = vmatpush1.bf16.msra.mxu0 %v506
          %526 = vmatprep.subr.bf16.mxu0 0
          %527 = vmatpush1.bf16.msra.mxu0 %v505
          %528 = vmatprep.subr.bf16.mxu0 0
          %529 = vmatpush1.bf16.msra.mxu0 %v504
          %530 = vmatprep.subr.bf16.mxu0 0
          %531 = vmatpush1.bf16.msra.mxu0 %v503
          %532 = vmatprep.subr.bf16.mxu0 0
          %533 = vmatpush1.bf16.msra.mxu0 %v502
          %534 = vmatprep.subr.bf16.mxu0 0
          %535 = vmatpush2.bf16.msra.mxu0 0
          %536 = vmatprep.subr.bf16.mxu0 0
          %537 = vmatpush2.bf16.msra.mxu0 0
          %538 = vmatprep.subr.bf16.mxu0 0
          %539 = vmatpush2.bf16.msra.mxu0 0
          %540 = vmatprep.subr.bf16.mxu0 0
          %541 = vmatpush2.bf16.msra.mxu0 0
          %542 = vmatprep.subr.bf16.mxu0 0
          %543 = vmatpush2.bf16.msra.mxu0 0
          %544 = vmatprep.subr.bf16.mxu0 0
          %545 = vmatpush2.bf16.msra.mxu0 0
          %546 = vmatprep.subr.bf16.mxu0 0
          %547 = vmatpush2.bf16.msra.mxu0 0
          %548 = vmatprep.subr.bf16.mxu0 0
          %549 = vmatpush2.bf16.msra.mxu0 0
          %550 = vmatprep.mubr.bf16.mxu0 0
          %551 = vmatmul.mubr.bf16.gmra.mxu0 %v446
          %v552 = vpop.f32.mrf.mxu0
          %v553 = vadd.f32 %v468, %v552
          %v554 = vpop.f32.mrf.mxu0
          %v555 = vpop.f32.mrf.mxu0
          %v556 = vpop.f32.mrf.mxu0
          %557 = vdwg.mxu0
          %vm558 = vcmask 130048
          %559 = vst.msk [vmem:[#allocation6] sm:$0xff] %vm558, %v553
        $region56: #{tpu_custom_call.1} parent=43 // pred_fallthru
          _
        // Predicated region
        $region57: #{tpu_custom_call.1} parent=43 // pred_check
          %p560 = pneg %p175
        $region58: #{tpu_custom_call.1} parent=43 // pred_check_branch
          %562 = sbr.rel (%p560) target = $region60
        $region59: #{tpu_custom_call.1} parent=43 // pred_region
          %s564 = ssub.s32 128, 128
          %565 = vsyncadd [#allocation5], %s564
          %s567 = sshll.u32 [#allocation6], 4
          %s568 = int_to_ptr.vmem [resolvable:$true] %s567
          %570 = dma.vmem_to_hbm [thread:$0]  %s568, 128, %s6, [#allocation5]
        $region60: #{tpu_custom_call.1} parent=43 // pred_fallthru
          _
        // Predicated region
        $region61: #{tpu_custom_call.1} parent=43 // pred_check
          %p571 = pneg %p175
        $region62: #{tpu_custom_call.1} parent=43 // pred_check_branch
          %573 = sbr.rel (%p571) target = $region64
        $region63: #{tpu_custom_call.1} parent=43 // pred_region
          %574 = dma.done [#allocation5], 128
        $region64: #{tpu_custom_call.1} parent=43 // pred_fallthru
          _
      $region44: #{tpu_custom_call.1} parent=5 // pred_fallthru
        _
      %p575 = scmp.le.s32.totalorder 2, %s16
      // Predicated region
      $region65: #{tpu_custom_call.1} parent=5 // pred_check
        %p576 = pneg %p575
      $region66: #{tpu_custom_call.1} parent=5 // pred_check_branch
        %578 = sbr.rel (%p576) target = $region68
      $region67: #{tpu_custom_call.1} parent=5 // pred_region
        %s579 = ssub.s32 %s16, 2
      $region68: #{tpu_custom_call.1} parent=5 // pred_fallthru
        _
    $region6: #{tpu_custom_call.1} parent=1 // loop_footer
      %s20 = sadd.s32 1, %s16
    $region7: #{tpu_custom_call.1} parent=1 // loop_footer_branch
      %15 = sbr.rel target = $region3
    $region8: #{tpu_custom_call.1} parent=1 // loop_exit
      _
    %580 = vsyncpa [#allocation4], 1
    %s581 = scalar_lea.sflag [#allocation4], 1
    %582 = vsyncpa %s581, 1
    %583 = vsyncpa [#allocation5], 1
    %s584 = scalar_lea.sflag [#allocation5], 1
    %585 = vsyncpa %s584, 1

</llo_original>
